<compile_context>
chip_gen: v7x
topology: tpu7x:2x2x1
jax: 0.10.0
libtpu: 0.0.40
codegen_flags: <defaults>
</compile_context>

<pallas_src>
import functools

import jax
import jax.numpy as jnp
from jax import lax
from jax.experimental import pallas as pl
from jax.experimental.pallas import tpu as pltpu

_VMEM_LIMIT_BYTES = 48 << 20  # fits v7x's 64 MiB VMEM, lifts v5e/v6e defaults


def _joints_mse_kernel(pred_ref, gt_ref, w_ref, out_ref, *,
                       rows_total, use_target_weight):
    # pred_ref / gt_ref : (TILE_R, HW) tile of the flattened (B*J, HW) heatmaps
    # w_ref             : (TILE_R, 1)  per-row (batch, joint) weight
    # out_ref           : (TILE_R, 1)  per-row weighted partial sums
    tile_r = pred_ref.shape[0]
    i = pl.program_id(0)

    # Valid-row mask for the (possibly padded) last tile.
    valid_rows = rows_total - i * tile_r
    row_ids = lax.broadcasted_iota(jnp.int32, (tile_r, 1), 0)
    row_mask = row_ids < valid_rows

    diff = pred_ref[...].astype(jnp.float32) - gt_ref[...].astype(jnp.float32)
    # Select (not multiply-by-zero) before squaring: padded-row garbage,
    # even NaN/Inf, cannot leak into the reduction.
    diff = jnp.where(row_mask, diff, jnp.float32(0.0))

    # Per-row sum of squares, then fold the weight in as w^2 on the row sums.
    row_sums = jnp.sum(diff * diff, axis=1, keepdims=True)      # (TILE_R, 1)
    if use_target_weight:
        w = w_ref[...].astype(jnp.float32)
        row_sums = row_sums * (w * w)
    # Guard against garbage (possibly NaN) weights in the padded rows.
    out_ref[...] = jnp.where(row_mask, row_sums, jnp.float32(0.0))


def _cdiv(a, b):
    return -(-a // b)


def _round_up(x, m):
    return _cdiv(x, m) * m


def _row_alignment(itemsize):
    # Min sublane tile per dtype: 8 rows for 4-byte, 16 for 2-byte, 32 for 1-byte.
    return max(8, 32 // max(1, itemsize))


def _target_block_bytes():
    # ~8 MiB per input block on v7x (higher HBM BW -> amortize per-step
    # overhead over bigger steps); ~4 MiB elsewhere.
    try:
        kind = jax.devices()[0].device_kind.lower()
    except Exception:
        kind = ""
    return (8 << 20) if "v7" in kind else (4 << 20)


def _pick_tile_rows(n_rows, hw, itemsize, target_bytes, align):
    """Largest `align`-multiple row count that fits the byte budget.

    No exact-divisor requirement: the grid uses cdiv and the kernel masks the
    padded tail rows.  Also guarantees >= 2 grid steps whenever the row count
    allows splitting (pipelining + v7x two-TensorCore sharding).
    """
    row_bytes = max(1, hw * itemsize)
    budget_rows = max(align, (target_bytes // row_bytes) // align * align)
    tile = min(budget_rows, _round_up(n_rows, align))
    if _cdiv(n_rows, tile) < 2 and n_rows > align:
        tile = _round_up(_cdiv(n_rows, 2), align)
    return tile


def joints_mse_loss(output, target, target_weight, *, use_target_weight=True):
    """output, target: (B, J, H, W); target_weight: (B, J, 1). Returns scalar."""
    B, J, H, W = output.shape
    HW = H * W
    R = B * J

    # Layout-preserving reshapes only — no HBM copies, no transposes.
    pred = output.reshape(R, HW)
    gt = target.reshape(R, HW)
    tw = target_weight.reshape(R, 1)

    itemsize = jnp.dtype(output.dtype).itemsize
    align = _row_alignment(itemsize)
    tile_r = _pick_tile_rows(R, HW, itemsize, _target_block_bytes(), align)
    num_tiles = _cdiv(R, tile_r)

    kernel = functools.partial(_joints_mse_kernel,
                               rows_total=R,
                               use_target_weight=use_target_weight)

    out = pl.pallas_call(
        kernel,
        out_shape=jax.ShapeDtypeStruct((num_tiles * tile_r, 1), jnp.float32),
        grid_spec=pltpu.PrefetchScalarGridSpec(
            num_scalar_prefetch=0,
            grid=(num_tiles,),
            in_specs=[
                pl.BlockSpec((tile_r, HW), lambda i: (i, 0)),
                pl.BlockSpec((tile_r, HW), lambda i: (i, 0)),
                pl.BlockSpec((tile_r, 1), lambda i: (i, 0)),
            ],
            out_specs=pl.BlockSpec((tile_r, 1), lambda i: (i, 0)),
        ),
        compiler_params=pltpu.CompilerParams(
            dimension_semantics=("parallel",),
            vmem_limit_bytes=_VMEM_LIMIT_BYTES),
        cost_estimate=pl.CostEstimate(
            flops=4 * R * HW,
            transcendentals=0,
            bytes_accessed=2 * R * HW * itemsize + R * itemsize
            + num_tiles * tile_r * 4),
    )(pred, gt, tw)

    # Tiny final reduction over per-row partials + the shared 1/(B*HW) mean.
    return jnp.sum(out) * (1.0 / float(B * HW))


def _reference(output, target, target_weight, use_target_weight=True):
    B, J, H, W = output.shape
    pred = output.reshape(B, J, -1)
    gt = target.reshape(B, J, -1)
    loss = 0.0
    for idx in range(J):
        p = pred[:, idx, :]
        g = gt[:, idx, :]
        if use_target_weight:
            w = target_weight[:, idx]  # (B, 1)
            p = p * w
            g = g * w
        loss = loss + jnp.mean((p - g) ** 2)
    return loss


def _check(B, J, H, W, key):
    k1, k2, k3 = jax.random.split(key, 3)
    output = jax.random.normal(k1, (B, J, H, W), dtype=jnp.float32)
    target = jax.random.normal(k2, (B, J, H, W), dtype=jnp.float32)
    target_weight = jax.random.uniform(k3, (B, J, 1), dtype=jnp.float32)

    for use_w in (True, False):
        got = joints_mse_loss(output, target, target_weight,
                              use_target_weight=use_w)
        got = jax.block_until_ready(got)
        ref = _reference(output, target, target_weight, use_target_weight=use_w)
        assert jnp.allclose(got, ref, rtol=1e-5, atol=1e-5), (B, J, use_w, got, ref)


if __name__ == "__main__":
    key = jax.random.PRNGKey(0)
    k_a, k_b = jax.random.split(key)

    # Primary small shape (single tile path).
    _check(2, 4, 16, 16, k_a)
    # Non-multiple row count (exercises cdiv grid + tail-row masking, 2 tiles).
    _check(3, 5, 16, 16, k_b)

    print("KERNEL_OK")
</pallas_src>

<mosaic_0001>
module attributes {stable_mosaic.version = 11 : i64} {
  func.func @_joints_mse_kernel(%arg0: i32, %arg1: memref<8x256xf32, #tpu.memory_space<vmem>>, %arg2: memref<8x256xf32, #tpu.memory_space<vmem>>, %arg3: memref<8x1xf32, #tpu.memory_space<vmem>>, %arg4: memref<8x1xf32, #tpu.memory_space<vmem>>) attributes {dimension_semantics = [#tpu.dimension_semantics<parallel>], iteration_bounds = array<i64: 1>, scalar_prefetch = 0 : i64, scratch_operands = 0 : i64, tpu.core_type = #tpu.core_type<tc>, window_params = [{transform_indices = @transform_0, window_bounds = array<i64: 8, 256>}, {transform_indices = @transform_1, window_bounds = array<i64: 8, 256>}, {transform_indices = @transform_2, window_bounds = array<i64: 8, 1>}, {transform_indices = @transform_3, window_bounds = array<i64: 8, 1>}]} {
    %c8_i32 = arith.constant 8 : i32
    %0 = arith.muli %arg0, %c8_i32 : i32
    %c8_i32_0 = arith.constant 8 : i32
    %1 = arith.subi %c8_i32_0, %0 : i32
    %2 = tpu.iota {dimensions = array<i32: 0>} : vector<8x1xi32>
    %3 = vector.broadcast %1 : i32 to vector<8x1xi32>
    %4 = arith.cmpi slt, %2, %3 : vector<8x1xi32>
    %c0 = arith.constant 0 : index
    %c0_1 = arith.constant 0 : index
    %5 = vector.load %arg1[%c0, %c0_1] : memref<8x256xf32, #tpu.memory_space<vmem>>, vector<8x256xf32>
    %c0_2 = arith.constant 0 : index
    %c0_3 = arith.constant 0 : index
    %6 = vector.load %arg2[%c0_2, %c0_3] : memref<8x256xf32, #tpu.memory_space<vmem>>, vector<8x256xf32>
    %7 = arith.subf %5, %6 : vector<8x256xf32>
    %cst = arith.constant 0.000000e+00 : f32
    %8 = vector.shape_cast %4 : vector<8x1xi1> to vector<8x1xi1>
    %9 = vector.broadcast %8 : vector<8x1xi1> to vector<8x256xi1>
    %10 = vector.broadcast %cst : f32 to vector<8x256xf32>
    %11 = arith.select %9, %7, %10 : vector<8x256xi1>, vector<8x256xf32>
    %12 = arith.mulf %11, %11 : vector<8x256xf32>
    %cst_4 = arith.constant dense<0.000000e+00> : vector<8xf32>
    %13 = vector.multi_reduction <add>, %12, %cst_4 [1] : vector<8x256xf32> to vector<8xf32>
    %14 = vector.shape_cast %13 : vector<8xf32> to vector<8x1xf32>
    %c0_5 = arith.constant 0 : index
    %c0_6 = arith.constant 0 : index
    %15 = vector.load %arg3[%c0_5, %c0_6] : memref<8x1xf32, #tpu.memory_space<vmem>>, vector<8x1xf32>
    %16 = arith.mulf %15, %15 : vector<8x1xf32>
    %17 = arith.mulf %14, %16 : vector<8x1xf32>
    %cst_7 = arith.constant 0.000000e+00 : f32
    %18 = vector.broadcast %cst_7 : f32 to vector<8x1xf32>
    %19 = arith.select %4, %17, %18 : vector<8x1xi1>, vector<8x1xf32>
    %c0_8 = arith.constant 0 : index
    %c0_9 = arith.constant 0 : index
    %20 = vector.load %arg4[%c0_8, %c0_9] : memref<8x1xf32, #tpu.memory_space<vmem>>, vector<8x1xf32>
    tpu.vector_store %arg4[%c0_8, %c0_9], %19 {strides = array<i32>} : memref<8x1xf32, #tpu.memory_space<vmem>>, vector<8x1xf32>,
    return
  }
  func.func @transform_0(%arg0: i32) -> (i32, i32) {
    %c0_i32 = arith.constant 0 : i32
    %c0_i32_0 = arith.constant 0 : i32
    return %arg0, %c0_i32 : i32, i32
  }
  func.func @transform_1(%arg0: i32) -> (i32, i32) {
    %c0_i32 = arith.constant 0 : i32
    %c0_i32_0 = arith.constant 0 : i32
    return %arg0, %c0_i32 : i32, i32
  }
  func.func @transform_2(%arg0: i32) -> (i32, i32) {
    %c0_i32 = arith.constant 0 : i32
    %c0_i32_0 = arith.constant 0 : i32
    return %arg0, %c0_i32 : i32, i32
  }
  func.func @transform_3(%arg0: i32) -> (i32, i32) {
    %c0_i32 = arith.constant 0 : i32
    %c0_i32_0 = arith.constant 0 : i32
    return %arg0, %c0_i32 : i32, i32
  }
}

</mosaic_0001>

<llo_original>
// kernel: tpu_custom_call.1
$region0: #{tpu_custom_call.1}
  #allocation0 [shape = 'u32[]', space=smem, size = 0x4, offset = 0x4, fixed_abs, tag = 'smem constant byte address 0x4 - core index']
  #allocation1 [shape = 'u32[144,128]{1,0:T(1,128)}', space=vmem, size = 0x12000, scoped, tag = 'internal scratch']
  %s0 = inlined_call_operand.hbm [shape: f32[8,256], index: 0, kind: input, shape index: {}]
  %s1 = inlined_call_operand.hbm [shape: f32[8,256], index: 1, kind: input, shape index: {}]
  %s2 = inlined_call_operand.vmem [shape: f32[8,1], index: 2, kind: input, shape index: {}]
  %s3 = inlined_call_operand.vmem [shape: f32[8,1], index: 3, kind: output, shape index: {}]
  %s4 = sld [smem:[#allocation0]]
  $region30: #{tpu_custom_call.1} parent=0
    _
  %s6 = ssub.s32 1, %s4
  %s7 = scalar_select 0, %s6, %s4
  $region1: #{tpu_custom_call.1} parent=0
    #allocation2 [shape = 'u8[8192]{0}', space=vmem, size = 0x2000, scoped, tag = 'input window, operand 0, single buffered']
    #allocation3 [shape = 's32[1]{0}', space=sflag, size = 0x4, scoped, tag = 'scoped memory for tpu_custom_call.1']
    #allocation4 [shape = 'u8[8192]{0}', space=vmem, size = 0x2000, scoped, tag = 'input window, operand 1, single buffered']
    #allocation5 [shape = 's32[1]{0}', space=sflag, size = 0x4, scoped, tag = 'scoped memory for tpu_custom_call.1']
    %8 = vsyncpa [#allocation3], 0
    %9 = vsyncpa [#allocation5], 0
    // Predicated region
    $region2: #{tpu_custom_call.1} parent=1 // pred_check
      _
    $region3: #{tpu_custom_call.1} parent=1 // pred_check_branch
      %11 = sbr.rel (0) target = $region5
    $region4: #{tpu_custom_call.1} parent=1 // pred_region
      %s13 = ssub.s32 256, 256
      %14 = vsyncadd [#allocation3], %s13
      %s16 = sshll.u32 [#allocation2], 4
      %s17 = int_to_ptr.vmem [resolvable:$true] %s16
      %19 = dma.hbm_to_vmem [thread:$0]  %s0, 256, %s17, [#allocation3]
    $region5: #{tpu_custom_call.1} parent=1 // pred_fallthru
      _
    // Predicated region
    $region6: #{tpu_custom_call.1} parent=1 // pred_check
      _
    $region7: #{tpu_custom_call.1} parent=1 // pred_check_branch
      %21 = sbr.rel (0) target = $region9
    $region8: #{tpu_custom_call.1} parent=1 // pred_region
      %s23 = ssub.s32 256, 256
      %24 = vsyncadd [#allocation5], %s23
      %s26 = sshll.u32 [#allocation4], 4
      %s27 = int_to_ptr.vmem [resolvable:$true] %s26
      %29 = dma.hbm_to_vmem [thread:$0]  %s1, 256, %s27, [#allocation5]
    $region9: #{tpu_custom_call.1} parent=1 // pred_fallthru
      _
    // Predicated region
    $region10: #{tpu_custom_call.1} parent=1 // pred_check
      _
    $region11: #{tpu_custom_call.1} parent=1 // pred_check_branch
      %31 = sbr.rel (0) target = $region13
    $region12: #{tpu_custom_call.1} parent=1 // pred_region
      _
    $region13: #{tpu_custom_call.1} parent=1 // pred_fallthru
      _
    // Predicated region
    $region14: #{tpu_custom_call.1} parent=1 // pred_check
      _
    $region15: #{tpu_custom_call.1} parent=1 // pred_check_branch
      %33 = sbr.rel (0) target = $region17
    $region16: #{tpu_custom_call.1} parent=1 // pred_region
      %34 = dma.done [#allocation3], 256
    $region17: #{tpu_custom_call.1} parent=1 // pred_fallthru
      _
    // Predicated region
    $region18: #{tpu_custom_call.1} parent=1 // pred_check
      _
    $region19: #{tpu_custom_call.1} parent=1 // pred_check_branch
      %36 = sbr.rel (0) target = $region21
    $region20: #{tpu_custom_call.1} parent=1 // pred_region
      %37 = dma.done [#allocation5], 256
    $region21: #{tpu_custom_call.1} parent=1 // pred_fallthru
      _
    %s38 = smul.u32 0, 8
    %s39 = ssub.s32 8, %s38
    %v40 = vlaneseq
    %v41 = vshrl.u32 %v40, 7
    %v42 = vstv %s39
    %vm43 = vcmp.lt.s32.totalorder %v41, %v42
    %v44 = vld [vmem:[#allocation2] sm:$0xff]
    %v45 = vld [vmem:[#allocation2 + $0x8] sm:$0xff]
    %v46 = vld [vmem:[#allocation4] sm:$0xff]
    %v47 = vld [vmem:[#allocation4 + $0x8] sm:$0xff]
    %v48 = vsub.f32 %v44, %v46
    %v49 = vsub.f32 %v45, %v47
    %v50 = vsel %vm43, 1, 0
    %vm51 = vcmp.eq.s32.totalorder %v50, 1
    %v52 = vsel %vm51, %v48, 0.0
    %v53 = vsel %vm51, %v49, 0.0
    %v54 = vmul.f32 %v52, %v52
    %v55 = vmul.f32 %v53, %v53
    %v56 = vadd.f32 %v54, %v55
    %57 = vadd.xlane.f32.xlu0 %v56
    %v58 = vpop.xlane.xlu0 %57
    %v59 = vld [vmem:[%s2] sm:$0xff]
    %v60 = vmul.f32 %v59, %v59
    %v61 = vmul.f32 %v58, %v60
    %v62 = vsel %vm43, %v61, 0.0
    %vm63 = vcmask 7168
    %64 = vst.msk [vmem:[%s3] sm:$0xff] %vm63, %v62
    // Predicated region
    $region22: #{tpu_custom_call.1} parent=1 // pred_check
      _
    $region23: #{tpu_custom_call.1} parent=1 // pred_check_branch
      %66 = sbr.rel (0) target = $region25
    $region24: #{tpu_custom_call.1} parent=1 // pred_region
      _
    $region25: #{tpu_custom_call.1} parent=1 // pred_fallthru
      _
    // Predicated region
    $region26: #{tpu_custom_call.1} parent=1 // pred_check
      _
    $region27: #{tpu_custom_call.1} parent=1 // pred_check_branch
      %68 = sbr.rel (0) target = $region29
    $region28: #{tpu_custom_call.1} parent=1 // pred_region
      _
    $region29: #{tpu_custom_call.1} parent=1 // pred_fallthru
      _
    %69 = vsyncpa [#allocation3], 1
    %70 = vsyncpa [#allocation5], 1

</llo_original>
